<compile_context>
chip_gen: v6e
topology: v6e:2x2x1
jax: 0.10.0
libtpu: 0.0.40
codegen_flags: <defaults>
</compile_context>

<pallas_src>
import jax
import jax.numpy as jnp
from jax.experimental import pallas as pl
from jax.experimental.pallas import tpu as pltpu

OBS_DIM = 12
ACT_DIM = 2
HIDDEN_DIM = 128
IN_LANES = 16                    # obs (12) + bias lane (1) padded to 16
OUT_LANES = 8                    # [p0, p1, value, 0...] packed output
FUSED_HIDDEN = 2 * HIDDEN_DIM    # [actor hidden | critic hidden]


def _round_up(n, m):
    return (n + m - 1) // m * m


def actor_critic_kernel(x_ref, w1_ref, w2_ref, b2_ref, w3_ref, b3_ref, out_ref):
    # x_ref: (TB, 16) f32, lane 12 holds the constant 1.0 bias input.
    # shared trunk: Linear(12->128) + Tanh  (bias folded into w1 row 12)
    x = x_ref[...].astype(w1_ref.dtype)
    h = jnp.tanh(jnp.dot(x, w1_ref[...], preferred_element_type=jnp.float32))

    # fused actor+critic hidden layer: one (TB,128)@(128,256) MXU pass + Tanh
    ac = jnp.tanh(
        jnp.dot(h.astype(w2_ref.dtype), w2_ref[...],
                preferred_element_type=jnp.float32)
        + b2_ref[...]
    )

    # fused heads: block-diagonal (256, 8) weight on stacked [a|c] activations
    #   y[:, 0:2] = a @ w_a2 + b_a2   (actor logits)
    #   y[:, 2]   = c @ w_c2 + b_c2   (critic value)
    y = (
        jnp.dot(ac.astype(w3_ref.dtype), w3_ref[...],
                preferred_element_type=jnp.float32)
        + b3_ref[...]
    )

    # exact 2-class softmax (closed form): p0 = 1 / (1 + exp(l1 - l0))
    l0 = y[:, 0:1]
    l1 = y[:, 1:2]
    val = y[:, 2:3]
    p0 = 1.0 / (1.0 + jnp.exp(l1 - l0))
    p1 = 1.0 - p0                      # probs sum to exactly 1

    lane = jax.lax.broadcasted_iota(jnp.int32, y.shape, dimension=1)
    out_ref[...] = jnp.where(lane == 0, p0,
                    jnp.where(lane == 1, p1,
                     jnp.where(lane == 2, val, 0.0)))


def pack_params(p, dtype=jnp.bfloat16):
    """One-time repack of the 5 Linear layers into 3 weight + 2 bias slabs.

    Weights are stored in `dtype` (bf16 by default -> native MXU operands);
    biases that are added post-matmul stay f32 for an exact add.
    """
    # shared: (12,128) -> (16,128); row 12 carries b_sh (bias-lane trick)
    w1 = jnp.zeros((IN_LANES, HIDDEN_DIM), jnp.float32)
    w1 = w1.at[:OBS_DIM, :].set(p["w_sh"])
    w1 = w1.at[OBS_DIM, :].set(p["b_sh"].reshape(-1))
    w1 = w1.astype(dtype)

    # fused hidden: [w_a1 | w_c1] -> (128, 256)
    w2 = jnp.concatenate([p["w_a1"], p["w_c1"]], axis=1).astype(dtype)
    b2 = jnp.concatenate(
        [p["b_a1"].reshape(1, HIDDEN_DIM), p["b_c1"].reshape(1, HIDDEN_DIM)],
        axis=1).astype(jnp.float32)

    # fused heads: block-diagonal (256, 8); lanes 0:2 actor, lane 2 critic
    w3 = jnp.zeros((FUSED_HIDDEN, OUT_LANES), jnp.float32)
    w3 = w3.at[:HIDDEN_DIM, :ACT_DIM].set(p["w_a2"])
    w3 = w3.at[HIDDEN_DIM:, ACT_DIM:ACT_DIM + 1].set(p["w_c2"])
    w3 = w3.astype(dtype)
    b3 = jnp.zeros((1, OUT_LANES), jnp.float32)
    b3 = b3.at[0, :ACT_DIM].set(p["b_a2"].reshape(-1))
    b3 = b3.at[0, ACT_DIM].set(p["b_c2"].reshape(-1)[0])

    return dict(w1=w1, w2=w2, b2=b2, w3=w3, b3=b3)


def actor_critic_forward(x, packed, *, tile_b=1024):
    B = x.shape[0]
    # Adaptive batch tile: multiple of 8, capped at tile_b, and chosen so that
    # B >= 16 always yields >= 2 grid tiles (feeds both v7x TensorCores).
    TB = min(tile_b, max(8, _round_up((B + 1) // 2, 8)))
    B_pad = _round_up(B, TB)
    n_tiles = B_pad // TB

    # (B_pad, 16) input: obs in lanes 0:12, constant 1.0 in lane 12 (bias lane).
    x_pad = jnp.zeros((B_pad, IN_LANES), jnp.float32)
    x_pad = x_pad.at[:B, :OBS_DIM].set(x.astype(jnp.float32))
    x_pad = x_pad.at[:, OBS_DIM].set(1.0)

    w1, w2, b2, w3, b3 = (packed[k] for k in ("w1", "w2", "b2", "w3", "b3"))

    flops = 2 * B_pad * (IN_LANES * HIDDEN_DIM
                         + HIDDEN_DIM * FUSED_HIDDEN
                         + FUSED_HIDDEN * OUT_LANES)
    transcendentals = B_pad * (HIDDEN_DIM + FUSED_HIDDEN + 1)
    bytes_accessed = (4 * x_pad.size
                      + w1.dtype.itemsize * w1.size
                      + w2.dtype.itemsize * w2.size
                      + w3.dtype.itemsize * w3.size
                      + 4 * (b2.size + b3.size)
                      + 4 * B_pad * OUT_LANES)

    out = pl.pallas_call(
        actor_critic_kernel,
        out_shape=jax.ShapeDtypeStruct((B_pad, OUT_LANES), jnp.float32),
        grid=(n_tiles,),
        in_specs=[
            pl.BlockSpec((TB, IN_LANES), lambda i: (i, 0)),                # x tile
            pl.BlockSpec((IN_LANES, HIDDEN_DIM), lambda i: (0, 0)),        # w1 (resident)
            pl.BlockSpec((HIDDEN_DIM, FUSED_HIDDEN), lambda i: (0, 0)),    # w2
            pl.BlockSpec((1, FUSED_HIDDEN), lambda i: (0, 0)),             # b2
            pl.BlockSpec((FUSED_HIDDEN, OUT_LANES), lambda i: (0, 0)),     # w3
            pl.BlockSpec((1, OUT_LANES), lambda i: (0, 0)),                # b3
        ],
        out_specs=pl.BlockSpec((TB, OUT_LANES), lambda i: (i, 0)),
        compiler_params=pltpu.CompilerParams(
            dimension_semantics=("parallel",),
            vmem_limit_bytes=32 * 1024 * 1024,   # fits every gen incl. v7x (64 MiB)
        ),
        cost_estimate=pl.CostEstimate(
            flops=flops,
            transcendentals=transcendentals,
            bytes_accessed=bytes_accessed,
        ),
    )(x_pad, w1, w2, b2, w3, b3)

    probs = out[:B, :ACT_DIM]
    value = out[:B, ACT_DIM:ACT_DIM + 1]
    return probs, value


def init_params(key):
    """Deterministic init mimicking PyTorch Linear default (uniform +-1/sqrt(fan_in))."""
    def linear(key, fan_in, fan_out):
        kw, kb = jax.random.split(key)
        bound = 1.0 / jnp.sqrt(fan_in)
        w = jax.random.uniform(kw, (fan_in, fan_out), jnp.float32, -bound, bound)
        b = jax.random.uniform(kb, (1, fan_out), jnp.float32, -bound, bound)
        return w, b

    k1, k2, k3, k4, k5 = jax.random.split(key, 5)
    w_sh, b_sh = linear(k1, OBS_DIM, HIDDEN_DIM)
    w_a1, b_a1 = linear(k2, HIDDEN_DIM, HIDDEN_DIM)
    w_a2, b_a2 = linear(k3, HIDDEN_DIM, ACT_DIM)
    w_c1, b_c1 = linear(k4, HIDDEN_DIM, HIDDEN_DIM)
    w_c2, b_c2 = linear(k5, HIDDEN_DIM, 1)
    return dict(
        w_sh=w_sh, b_sh=b_sh,
        w_a1=w_a1, b_a1=b_a1,
        w_a2=w_a2, b_a2=b_a2,
        w_c1=w_c1, b_c1=b_c1,
        w_c2=w_c2, b_c2=b_c2,
    )


def reference_forward(x, p):
    h = jnp.tanh(x @ p["w_sh"] + p["b_sh"])
    a = jnp.tanh(h @ p["w_a1"] + p["b_a1"])
    probs = jax.nn.softmax(a @ p["w_a2"] + p["b_a2"], axis=-1)
    c = jnp.tanh(h @ p["w_c1"] + p["b_c1"])
    value = c @ p["w_c2"] + p["b_c2"]
    return probs, value


if __name__ == "__main__":
    key = jax.random.PRNGKey(0)
    kx, kp = jax.random.split(key)

    params = init_params(kp)
    packed = pack_params(params)               # bf16 MXU operands

    # B=8 exercises the single-tile acting path; B=64 exercises two grid tiles.
    for B in (8, 64):
        x = jax.random.normal(jax.random.fold_in(kx, B), (B, OBS_DIM), jnp.float32)

        probs, value = actor_critic_forward(x, packed)
        probs = jax.block_until_ready(probs)
        value = jax.block_until_ready(value)

        ref_probs, ref_value = reference_forward(x, params)
        assert probs.shape == (B, ACT_DIM)
        assert value.shape == (B, 1)
        # Tolerances account for bf16 MXU operands (f32 accumulation); pass
        # pack_params(params, dtype=jnp.float32) for exact-f32 matmuls.
        assert jnp.allclose(probs, ref_probs, atol=2e-2, rtol=2e-2)
        assert jnp.allclose(value, ref_value, atol=3e-2, rtol=2e-2)
        # exact closed-form softmax -> probs sum to 1 exactly
        assert jnp.allclose(jnp.sum(probs, axis=-1), 1.0, atol=1e-6)

    print("KERNEL_OK")
</pallas_src>

<mosaic_0001>
module attributes {stable_mosaic.version = 11 : i64} {
  func.func @actor_critic_kernel(%arg0: i32, %arg1: memref<8x16xf32, #tpu.memory_space<vmem>>, %arg2: memref<16x128xbf16, #tpu.memory_space<vmem>>, %arg3: memref<128x256xbf16, #tpu.memory_space<vmem>>, %arg4: memref<1x256xf32, #tpu.memory_space<vmem>>, %arg5: memref<256x8xbf16, #tpu.memory_space<vmem>>, %arg6: memref<1x8xf32, #tpu.memory_space<vmem>>, %arg7: memref<8x8xf32, #tpu.memory_space<vmem>>) attributes {dimension_semantics = [#tpu.dimension_semantics<parallel>], iteration_bounds = array<i64: 1>, scalar_prefetch = 0 : i64, scratch_operands = 0 : i64, tpu.core_type = #tpu.core_type<tc>, window_params = [{transform_indices = @transform_0, window_bounds = array<i64: 8, 16>}, {pipeline_mode = #tpu.pipeline_mode<synchronous>, transform_indices = @transform_1, window_bounds = array<i64: 16, 128>}, {pipeline_mode = #tpu.pipeline_mode<synchronous>, transform_indices = @transform_2, window_bounds = array<i64: 128, 256>}, {pipeline_mode = #tpu.pipeline_mode<synchronous>, transform_indices = @transform_3, window_bounds = array<i64: 1, 256>}, {pipeline_mode = #tpu.pipeline_mode<synchronous>, transform_indices = @transform_4, window_bounds = array<i64: 256, 8>}, {pipeline_mode = #tpu.pipeline_mode<synchronous>, transform_indices = @transform_5, window_bounds = array<i64: 1, 8>}, {transform_indices = @transform_6, window_bounds = array<i64: 8, 8>}]} {
    %c0 = arith.constant 0 : index
    %c0_0 = arith.constant 0 : index
    %0 = vector.load %arg1[%c0, %c0_0] : memref<8x16xf32, #tpu.memory_space<vmem>>, vector<8x16xf32>
    %1 = arith.truncf %0 : vector<8x16xf32> to vector<8x16xbf16>
    %c0_1 = arith.constant 0 : index
    %c0_2 = arith.constant 0 : index
    %2 = vector.load %arg2[%c0_1, %c0_2] : memref<16x128xbf16, #tpu.memory_space<vmem>>, vector<16x128xbf16>
    %cst = arith.constant dense<0.000000e+00> : vector<8x128xf32>
    %3 = tpu.matmul %1, %2, %cst {dimension_numbers = #tpu.dot_dimension_numbers<[1], [0], [0], [1], [0, 0, 1, 1], [], []>} : vector<8x16xbf16>, vector<16x128xbf16>, vector<8x128xf32> -> vector<8x128xf32>
    %4 = math.tanh %3 : vector<8x128xf32>
    %5 = arith.truncf %4 : vector<8x128xf32> to vector<8x128xbf16>
    %c0_3 = arith.constant 0 : index
    %c0_4 = arith.constant 0 : index
    %6 = vector.load %arg3[%c0_3, %c0_4] : memref<128x256xbf16, #tpu.memory_space<vmem>>, vector<128x256xbf16>
    %cst_5 = arith.constant dense<0.000000e+00> : vector<8x256xf32>
    %7 = tpu.matmul %5, %6, %cst_5 {dimension_numbers = #tpu.dot_dimension_numbers<[1], [0], [0], [1], [0, 0, 1, 1], [], []>} : vector<8x128xbf16>, vector<128x256xbf16>, vector<8x256xf32> -> vector<8x256xf32>
    %c0_6 = arith.constant 0 : index
    %c0_7 = arith.constant 0 : index
    %8 = vector.load %arg4[%c0_6, %c0_7] : memref<1x256xf32, #tpu.memory_space<vmem>>, vector<1x256xf32>
    %9 = vector.broadcast %8 : vector<1x256xf32> to vector<8x256xf32>
    %10 = arith.addf %7, %9 : vector<8x256xf32>
    %11 = math.tanh %10 : vector<8x256xf32>
    %12 = arith.truncf %11 : vector<8x256xf32> to vector<8x256xbf16>
    %c0_8 = arith.constant 0 : index
    %c0_9 = arith.constant 0 : index
    %13 = vector.load %arg5[%c0_8, %c0_9] : memref<256x8xbf16, #tpu.memory_space<vmem>>, vector<256x8xbf16>
    %cst_10 = arith.constant dense<0.000000e+00> : vector<8x8xf32>
    %14 = tpu.matmul %12, %13, %cst_10 {dimension_numbers = #tpu.dot_dimension_numbers<[1], [0], [0], [1], [0, 0, 1, 1], [], []>} : vector<8x256xbf16>, vector<256x8xbf16>, vector<8x8xf32> -> vector<8x8xf32>
    %c0_11 = arith.constant 0 : index
    %c0_12 = arith.constant 0 : index
    %15 = vector.load %arg6[%c0_11, %c0_12] : memref<1x8xf32, #tpu.memory_space<vmem>>, vector<1x8xf32>
    %16 = vector.broadcast %15 : vector<1x8xf32> to vector<8x8xf32>
    %17 = arith.addf %14, %16 : vector<8x8xf32>
    %18 = vector.extract_strided_slice %17 {offsets = [0, 0], sizes = [8, 1], strides = [1, 1]} : vector<8x8xf32> to vector<8x1xf32>
    %19 = vector.extract_strided_slice %17 {offsets = [0, 1], sizes = [8, 1], strides = [1, 1]} : vector<8x8xf32> to vector<8x1xf32>
    %20 = vector.extract_strided_slice %17 {offsets = [0, 2], sizes = [8, 1], strides = [1, 1]} : vector<8x8xf32> to vector<8x1xf32>
    %21 = arith.subf %19, %18 : vector<8x1xf32>
    %22 = math.exp %21 : vector<8x1xf32>
    %cst_13 = arith.constant 1.000000e+00 : f32
    %23 = vector.broadcast %cst_13 : f32 to vector<8x1xf32>
    %24 = arith.addf %23, %22 : vector<8x1xf32>
    %cst_14 = arith.constant 1.000000e+00 : f32
    %25 = vector.broadcast %cst_14 : f32 to vector<8x1xf32>
    %26 = arith.divf %25, %24 : vector<8x1xf32>
    %cst_15 = arith.constant 1.000000e+00 : f32
    %27 = vector.broadcast %cst_15 : f32 to vector<8x1xf32>
    %28 = arith.subf %27, %26 : vector<8x1xf32>
    %29 = tpu.iota {dimensions = array<i32: 1>} : vector<8x8xi32>
    %c0_i32 = arith.constant 0 : i32
    %30 = vector.broadcast %c0_i32 : i32 to vector<8x8xi32>
    %31 = arith.cmpi eq, %29, %30 : vector<8x8xi32>
    %c1_i32 = arith.constant 1 : i32
    %32 = vector.broadcast %c1_i32 : i32 to vector<8x8xi32>
    %33 = arith.cmpi eq, %29, %32 : vector<8x8xi32>
    %c2_i32 = arith.constant 2 : i32
    %34 = vector.broadcast %c2_i32 : i32 to vector<8x8xi32>
    %35 = arith.cmpi eq, %29, %34 : vector<8x8xi32>
    %cst_16 = arith.constant 0.000000e+00 : f32
    %36 = vector.shape_cast %20 : vector<8x1xf32> to vector<8x1xf32>
    %37 = vector.broadcast %36 : vector<8x1xf32> to vector<8x8xf32>
    %38 = vector.broadcast %cst_16 : f32 to vector<8x8xf32>
    %39 = arith.select %35, %37, %38 : vector<8x8xi1>, vector<8x8xf32>
    %40 = vector.shape_cast %28 : vector<8x1xf32> to vector<8x1xf32>
    %41 = vector.broadcast %40 : vector<8x1xf32> to vector<8x8xf32>
    %42 = arith.select %33, %41, %39 : vector<8x8xi1>, vector<8x8xf32>
    %43 = vector.shape_cast %26 : vector<8x1xf32> to vector<8x1xf32>
    %44 = vector.broadcast %43 : vector<8x1xf32> to vector<8x8xf32>
    %45 = arith.select %31, %44, %42 : vector<8x8xi1>, vector<8x8xf32>
    %c0_17 = arith.constant 0 : index
    %c0_18 = arith.constant 0 : index
    %46 = vector.load %arg7[%c0_17, %c0_18] : memref<8x8xf32, #tpu.memory_space<vmem>>, vector<8x8xf32>
    tpu.vector_store %arg7[%c0_17, %c0_18], %45 {strides = array<i32>} : memref<8x8xf32, #tpu.memory_space<vmem>>, vector<8x8xf32>,
    return
  }
  func.func @transform_0(%arg0: i32) -> (i32, i32) {
    %c0_i32 = arith.constant 0 : i32
    %c0_i32_0 = arith.constant 0 : i32
    return %arg0, %c0_i32 : i32, i32
  }
  func.func @transform_1(%arg0: i32) -> (i32, i32) {
    %c0_i32 = arith.constant 0 : i32
    %c0_i32_0 = arith.constant 0 : i32
    %c0_i32_1 = arith.constant 0 : i32
    return %c0_i32, %c0_i32_0 : i32, i32
  }
  func.func @transform_2(%arg0: i32) -> (i32, i32) {
    %c0_i32 = arith.constant 0 : i32
    %c0_i32_0 = arith.constant 0 : i32
    %c0_i32_1 = arith.constant 0 : i32
    return %c0_i32, %c0_i32_0 : i32, i32
  }
  func.func @transform_3(%arg0: i32) -> (i32, i32) {
    %c0_i32 = arith.constant 0 : i32
    %c0_i32_0 = arith.constant 0 : i32
    %c0_i32_1 = arith.constant 0 : i32
    return %c0_i32, %c0_i32_0 : i32, i32
  }
  func.func @transform_4(%arg0: i32) -> (i32, i32) {
    %c0_i32 = arith.constant 0 : i32
    %c0_i32_0 = arith.constant 0 : i32
    %c0_i32_1 = arith.constant 0 : i32
    return %c0_i32, %c0_i32_0 : i32, i32
  }
  func.func @transform_5(%arg0: i32) -> (i32, i32) {
    %c0_i32 = arith.constant 0 : i32
    %c0_i32_0 = arith.constant 0 : i32
    %c0_i32_1 = arith.constant 0 : i32
    return %c0_i32, %c0_i32_0 : i32, i32
  }
  func.func @transform_6(%arg0: i32) -> (i32, i32) {
    %c0_i32 = arith.constant 0 : i32
    %c0_i32_0 = arith.constant 0 : i32
    return %arg0, %c0_i32 : i32, i32
  }
}

</mosaic_0001>

<llo_original>
// kernel: tpu_custom_call.1
$region0: #{tpu_custom_call.1}
  #allocation0 [shape = 'u32[]', space=smem, size = 0x4, offset = 0x4, fixed_abs, tag = 'smem constant byte address 0x4 - core index']
  #allocation1 [shape = 'u32[144,128]{1,0:T(1,128)}', space=vmem, size = 0x12000, scoped, tag = 'internal scratch']
  %s0 = inlined_call_operand.vmem [shape: f32[8,16], index: 0, kind: input, shape index: {}]
  %s1 = inlined_call_operand.hbm [shape: bf16[16,128], index: 1, kind: input, shape index: {}]
  %s2 = inlined_call_operand.vmem [shape: bf16[128,256], index: 2, kind: input, shape index: {}]
  %s3 = inlined_call_operand.vmem [shape: f32[1,256], index: 3, kind: input, shape index: {}]
  %s4 = inlined_call_operand.vmem [shape: bf16[256,8], index: 4, kind: input, shape index: {}]
  %s5 = inlined_call_operand.vmem [shape: f32[1,8], index: 5, kind: input, shape index: {}]
  %s6 = inlined_call_operand.hbm [shape: f32[8,8], index: 6, kind: output, shape index: {}]
  %s7 = sld [smem:[#allocation0]]
  $region38: #{tpu_custom_call.1} parent=0
    _
  %s9 = ssub.s32 1, %s7
  %s10 = scalar_select 0, %s9, %s7
  $region1: #{tpu_custom_call.1} parent=0
    #allocation2 [shape = 'u8[4096]{0}', space=vmem, size = 0x1000, scoped, tag = 'input window, operand 1, single buffered']
    #allocation3 [shape = 's32[1]{0}', space=sflag, size = 0x4, scoped, tag = 'scoped memory for tpu_custom_call.1']
    #allocation4 [shape = 's32[1]{0}', space=sflag, size = 0x4, scoped, tag = 'scoped memory for tpu_custom_call.1']
    #allocation5 [shape = 'u8[4096]{0}', space=vmem, size = 0x1000, scoped, tag = 'output window, operand 0, single buffered']
    %11 = vsyncpa [#allocation3], 0
    %12 = vsyncpa [#allocation4], 0
    // Predicated region
    $region2: #{tpu_custom_call.1} parent=1 // pred_check
      _
    $region3: #{tpu_custom_call.1} parent=1 // pred_check_branch
      %14 = sbr.rel (0) target = $region5
    $region4: #{tpu_custom_call.1} parent=1 // pred_region
      _
    $region5: #{tpu_custom_call.1} parent=1 // pred_fallthru
      _
    // Predicated region
    $region6: #{tpu_custom_call.1} parent=1 // pred_check
      _
    $region7: #{tpu_custom_call.1} parent=1 // pred_check_branch
      %16 = sbr.rel (0) target = $region9
    $region8: #{tpu_custom_call.1} parent=1 // pred_region
      %s18 = ssub.s32 128, 128
      %19 = vsyncadd [#allocation3], %s18
      %s20 = sshll.u32 [#allocation2], 4
      %s21 = int_to_ptr.vmem [resolvable:$true] %s20
      %26 = dma.hbm_to_vmem [thread:$0]  %s1, 128, %s21, [#allocation3], 64, 64, 4
    $region9: #{tpu_custom_call.1} parent=1 // pred_fallthru
      _
    // Predicated region
    $region10: #{tpu_custom_call.1} parent=1 // pred_check
      _
    $region11: #{tpu_custom_call.1} parent=1 // pred_check_branch
      %28 = sbr.rel (0) target = $region13
    $region12: #{tpu_custom_call.1} parent=1 // pred_region
      _
    $region13: #{tpu_custom_call.1} parent=1 // pred_fallthru
      _
    // Predicated region
    $region14: #{tpu_custom_call.1} parent=1 // pred_check
      _
    $region15: #{tpu_custom_call.1} parent=1 // pred_check_branch
      %30 = sbr.rel (0) target = $region17
    $region16: #{tpu_custom_call.1} parent=1 // pred_region
      _
    $region17: #{tpu_custom_call.1} parent=1 // pred_fallthru
      _
    // Predicated region
    $region18: #{tpu_custom_call.1} parent=1 // pred_check
      _
    $region19: #{tpu_custom_call.1} parent=1 // pred_check_branch
      %32 = sbr.rel (0) target = $region21
    $region20: #{tpu_custom_call.1} parent=1 // pred_region
      _
    $region21: #{tpu_custom_call.1} parent=1 // pred_fallthru
      _
    // Predicated region
    $region22: #{tpu_custom_call.1} parent=1 // pred_check
      _
    $region23: #{tpu_custom_call.1} parent=1 // pred_check_branch
      %34 = sbr.rel (0) target = $region25
    $region24: #{tpu_custom_call.1} parent=1 // pred_region
      _
    $region25: #{tpu_custom_call.1} parent=1 // pred_fallthru
      _
    // Predicated region
    $region26: #{tpu_custom_call.1} parent=1 // pred_check
      _
    $region27: #{tpu_custom_call.1} parent=1 // pred_check_branch
      %36 = sbr.rel (0) target = $region29
    $region28: #{tpu_custom_call.1} parent=1 // pred_region
      %37 = dma.done [#allocation3], 128
    $region29: #{tpu_custom_call.1} parent=1 // pred_fallthru
      _
    %v39 = vld [vmem:[%s0] sm:$0xff]
    %v40 = vpack.c.bf16 %v39, %v39
    %v41 = vld [vmem:[#allocation2] sm:$0xf]
    %v42 = vld [vmem:[#allocation2 + $0x4] sm:$0xf]
    %v45 = vunpack.c.l.b16 %v41
    %v46 = vunpack.c.l.b16 %v42
    %v47 = vpack.c.b16 %v46, %v45
    %vm49 = vcmask 130048
    %v51 = vsel %vm49, %v40, 0
    %53 = vmatprep.subr.bf16.mxu0 0
    %54 = vmatpush1.bf16.msra.mxu0 0
    %55 = vmatprep.subr.bf16.mxu0 0
    %56 = vmatpush1.bf16.msra.mxu0 0
    %57 = vmatprep.subr.bf16.mxu0 0
    %58 = vmatpush1.bf16.msra.mxu0 0
    %59 = vmatprep.subr.bf16.mxu0 0
    %60 = vmatpush1.bf16.msra.mxu0 0
    %61 = vmatprep.subr.bf16.mxu0 0
    %62 = vmatpush1.bf16.msra.mxu0 0
    %63 = vmatprep.subr.bf16.mxu0 0
    %64 = vmatpush1.bf16.msra.mxu0 0
    %65 = vmatprep.subr.bf16.mxu0 0
    %66 = vmatpush1.bf16.msra.mxu0 0
    %67 = vmatprep.subr.bf16.mxu0 0
    %68 = vmatpush1.bf16.msra.mxu0 %v47
    %69 = vmatprep.subr.bf16.mxu0 0
    %70 = vmatpush2.bf16.msra.mxu0 0
    %71 = vmatprep.subr.bf16.mxu0 0
    %72 = vmatpush2.bf16.msra.mxu0 0
    %73 = vmatprep.subr.bf16.mxu0 0
    %74 = vmatpush2.bf16.msra.mxu0 0
    %75 = vmatprep.subr.bf16.mxu0 0
    %76 = vmatpush2.bf16.msra.mxu0 0
    %77 = vmatprep.subr.bf16.mxu0 0
    %78 = vmatpush2.bf16.msra.mxu0 0
    %79 = vmatprep.subr.bf16.mxu0 0
    %80 = vmatpush2.bf16.msra.mxu0 0
    %81 = vmatprep.subr.bf16.mxu0 0
    %82 = vmatpush2.bf16.msra.mxu0 0
    %83 = vmatprep.subr.bf16.mxu0 0
    %84 = vmatpush2.bf16.msra.mxu0 0
    %85 = vmatprep.mubr.bf16.mxu0 0
    %86 = vmatmul.mubr.bf16.gmra.mxu0 %v51
    %v87 = vpop.f32.mrf.mxu0
    %v88 = vadd.f32 0.0, %v87
    %v89 = vpop.f32.mrf.mxu0
    %v90 = vpop.f32.mrf.mxu0
    %v91 = vpop.f32.mrf.mxu0
    %92 = vdwg.mxu0
    %v93 = vtanh.pop %v88
    %v94 = vpack.c.bf16 %v93, %v93
    %v95 = vld [vmem:[%s2] sm:$0xff]
    %v96 = vld [vmem:[%s2 + $0x8] sm:$0xff]
    %v97 = vld [vmem:[%s2 + $0x10] sm:$0xff]
    %v98 = vld [vmem:[%s2 + $0x18] sm:$0xff]
    %v99 = vld [vmem:[%s2 + $0x20] sm:$0xff]
    %v100 = vld [vmem:[%s2 + $0x28] sm:$0xff]
    %v101 = vld [vmem:[%s2 + $0x30] sm:$0xff]
    %v102 = vld [vmem:[%s2 + $0x38] sm:$0xff]
    %v103 = vld [vmem:[%s2 + $0x40] sm:$0xff]
    %v104 = vld [vmem:[%s2 + $0x48] sm:$0xff]
    %v105 = vld [vmem:[%s2 + $0x50] sm:$0xff]
    %v106 = vld [vmem:[%s2 + $0x58] sm:$0xff]
    %v107 = vld [vmem:[%s2 + $0x60] sm:$0xff]
    %v108 = vld [vmem:[%s2 + $0x68] sm:$0xff]
    %v109 = vld [vmem:[%s2 + $0x70] sm:$0xff]
    %v110 = vld [vmem:[%s2 + $0x78] sm:$0xff]
    %v111 = vld [vmem:[%s3] sm:$0x3]
    %v113 = vlaneseq
    %v114 = vshrl.u32 %v113, 7
    %v115 = vsub.s32 0, %v114
    %v116 = vrot.slane %v111, %v115
    %v117 = vlaneseq
    %v118 = vshrl.u32 %v117, 7
    %v119 = vsub.s32 1, %v118
    %v120 = vrot.slane %v111, %v119
    %v139 = vunpack.c.l.b16 %v95
    %v140 = vunpack.c.h.b16 %v95
    %v141 = vunpack.c.l.b16 %v96
    %v142 = vunpack.c.h.b16 %v96
    %v143 = vunpack.c.l.b16 %v97
    %v144 = vunpack.c.h.b16 %v97
    %v145 = vunpack.c.l.b16 %v98
    %v146 = vunpack.c.h.b16 %v98
    %v147 = vunpack.c.l.b16 %v99
    %v148 = vunpack.c.h.b16 %v99
    %v149 = vunpack.c.l.b16 %v100
    %v150 = vunpack.c.h.b16 %v100
    %v151 = vunpack.c.l.b16 %v101
    %v152 = vunpack.c.h.b16 %v101
    %v153 = vunpack.c.l.b16 %v102
    %v154 = vunpack.c.h.b16 %v102
    %v155 = vunpack.c.l.b16 %v103
    %v156 = vunpack.c.h.b16 %v103
    %v157 = vunpack.c.l.b16 %v104
    %v158 = vunpack.c.h.b16 %v104
    %v159 = vunpack.c.l.b16 %v105
    %v160 = vunpack.c.h.b16 %v105
    %v161 = vunpack.c.l.b16 %v106
    %v162 = vunpack.c.h.b16 %v106
    %v163 = vunpack.c.l.b16 %v107
    %v164 = vunpack.c.h.b16 %v107
    %v165 = vunpack.c.l.b16 %v108
    %v166 = vunpack.c.h.b16 %v108
    %v167 = vunpack.c.l.b16 %v109
    %v168 = vunpack.c.h.b16 %v109
    %v169 = vunpack.c.l.b16 %v110
    %v170 = vunpack.c.h.b16 %v110
    %v171 = vpack.c.b16 %v141, %v139
    %v172 = vpack.c.b16 %v142, %v140
    %v173 = vpack.c.b16 %v145, %v143
    %v174 = vpack.c.b16 %v146, %v144
    %v175 = vpack.c.b16 %v149, %v147
    %v176 = vpack.c.b16 %v150, %v148
    %v177 = vpack.c.b16 %v153, %v151
    %v178 = vpack.c.b16 %v154, %v152
    %v179 = vpack.c.b16 %v157, %v155
    %v180 = vpack.c.b16 %v158, %v156
    %v181 = vpack.c.b16 %v161, %v159
    %v182 = vpack.c.b16 %v162, %v160
    %v183 = vpack.c.b16 %v165, %v163
    %v184 = vpack.c.b16 %v166, %v164
    %v185 = vpack.c.b16 %v169, %v167
    %v186 = vpack.c.b16 %v170, %v168
    %203 = vmatprep.subr.bf16.mxu0 %v186
    %204 = vmatpush1.bf16.msra.mxu0 %v185
    %205 = vmatprep.subr.bf16.mxu0 %v184
    %206 = vmatpush1.bf16.msra.mxu0 %v183
    %207 = vmatprep.subr.bf16.mxu0 %v182
    %208 = vmatpush1.bf16.msra.mxu0 %v181
    %209 = vmatprep.subr.bf16.mxu0 %v180
    %210 = vmatpush1.bf16.msra.mxu0 %v179
    %211 = vmatprep.subr.bf16.mxu0 %v178
    %212 = vmatpush1.bf16.msra.mxu0 %v177
    %213 = vmatprep.subr.bf16.mxu0 %v176
    %214 = vmatpush1.bf16.msra.mxu0 %v175
    %215 = vmatprep.subr.bf16.mxu0 %v174
    %216 = vmatpush1.bf16.msra.mxu0 %v173
    %217 = vmatprep.subr.bf16.mxu0 %v172
    %218 = vmatpush1.bf16.msra.mxu0 %v171
    %219 = vmatprep.subr.bf16.mxu0 0
    %220 = vmatpush2.bf16.msra.mxu0 0
    %221 = vmatprep.subr.bf16.mxu0 0
    %222 = vmatpush2.bf16.msra.mxu0 0
    %223 = vmatprep.subr.bf16.mxu0 0
    %224 = vmatpush2.bf16.msra.mxu0 0
    %225 = vmatprep.subr.bf16.mxu0 0
    %226 = vmatpush2.bf16.msra.mxu0 0
    %227 = vmatprep.subr.bf16.mxu0 0
    %228 = vmatpush2.bf16.msra.mxu0 0
    %229 = vmatprep.subr.bf16.mxu0 0
    %230 = vmatpush2.bf16.msra.mxu0 0
    %231 = vmatprep.subr.bf16.mxu0 0
    %232 = vmatpush2.bf16.msra.mxu0 0
    %233 = vmatprep.subr.bf16.mxu0 0
    %234 = vmatpush2.bf16.msra.mxu0 0
    %235 = vmatprep.mubr.bf16.mxu0 0
    %236 = vmatmul.mubr.bf16.gmra.mxu0 %v94
    %v237 = vpop.f32.mrf.mxu0
    %v238 = vadd.f32 %v116, %v237
    %v239 = vpop.f32.mrf.mxu0
    %v240 = vadd.f32 %v120, %v239
    %v241 = vpop.f32.mrf.mxu0
    %v242 = vpop.f32.mrf.mxu0
    %243 = vdwg.mxu0
    %v244 = vtanh.pop %v238
    %v245 = vtanh.pop %v240
    %v246 = vpack.c.bf16 %v244, %v244
    %v247 = vpack.c.bf16 %v245, %v245
    %v248 = vld [vmem:[%s4] sm:$0xf]
    %v249 = vld [vmem:[%s4 + $0x4] sm:$0xf]
    %v250 = vld [vmem:[%s4 + $0x8] sm:$0xf]
    %v251 = vld [vmem:[%s4 + $0xc] sm:$0xf]
    %v252 = vld [vmem:[%s4 + $0x10] sm:$0xf]
    %v253 = vld [vmem:[%s4 + $0x14] sm:$0xf]
    %v254 = vld [vmem:[%s4 + $0x18] sm:$0xf]
    %v255 = vld [vmem:[%s4 + $0x1c] sm:$0xf]
    %v256 = vld [vmem:[%s4 + $0x20] sm:$0xf]
    %v257 = vld [vmem:[%s4 + $0x24] sm:$0xf]
    %v258 = vld [vmem:[%s4 + $0x28] sm:$0xf]
    %v259 = vld [vmem:[%s4 + $0x2c] sm:$0xf]
    %v260 = vld [vmem:[%s4 + $0x30] sm:$0xf]
    %v261 = vld [vmem:[%s4 + $0x34] sm:$0xf]
    %v262 = vld [vmem:[%s4 + $0x38] sm:$0xf]
    %v263 = vld [vmem:[%s4 + $0x3c] sm:$0xf]
    %v264 = vld [vmem:[%s4 + $0x40] sm:$0xf]
    %v265 = vld [vmem:[%s4 + $0x44] sm:$0xf]
    %v266 = vld [vmem:[%s4 + $0x48] sm:$0xf]
    %v267 = vld [vmem:[%s4 + $0x4c] sm:$0xf]
    %v268 = vld [vmem:[%s4 + $0x50] sm:$0xf]
    %v269 = vld [vmem:[%s4 + $0x54] sm:$0xf]
    %v270 = vld [vmem:[%s4 + $0x58] sm:$0xf]
    %v271 = vld [vmem:[%s4 + $0x5c] sm:$0xf]
    %v272 = vld [vmem:[%s4 + $0x60] sm:$0xf]
    %v273 = vld [vmem:[%s4 + $0x64] sm:$0xf]
    %v274 = vld [vmem:[%s4 + $0x68] sm:$0xf]
    %v275 = vld [vmem:[%s4 + $0x6c] sm:$0xf]
    %v276 = vld [vmem:[%s4 + $0x70] sm:$0xf]
    %v277 = vld [vmem:[%s4 + $0x74] sm:$0xf]
    %v278 = vld [vmem:[%s4 + $0x78] sm:$0xf]
    %v279 = vld [vmem:[%s4 + $0x7c] sm:$0xf]
    %v280 = vld [vmem:[%s5] sm:$0x1]
    %v282 = vlaneseq
    %v283 = vshrl.u32 %v282, 7
    %v284 = vsub.s32 0, %v283
    %v285 = vrot.slane %v280, %v284
    %v319 = vunpack.c.l.b16 %v248
    %v320 = vunpack.c.l.b16 %v249
    %v321 = vunpack.c.l.b16 %v250
    %v322 = vunpack.c.l.b16 %v251
    %v323 = vunpack.c.l.b16 %v252
    %v324 = vunpack.c.l.b16 %v253
    %v325 = vunpack.c.l.b16 %v254
    %v326 = vunpack.c.l.b16 %v255
    %v327 = vunpack.c.l.b16 %v256
    %v328 = vunpack.c.l.b16 %v257
    %v329 = vunpack.c.l.b16 %v258
    %v330 = vunpack.c.l.b16 %v259
    %v331 = vunpack.c.l.b16 %v260
    %v332 = vunpack.c.l.b16 %v261
    %v333 = vunpack.c.l.b16 %v262
    %v334 = vunpack.c.l.b16 %v263
    %v335 = vunpack.c.l.b16 %v264
    %v336 = vunpack.c.l.b16 %v265
    %v337 = vunpack.c.l.b16 %v266
    %v338 = vunpack.c.l.b16 %v267
    %v339 = vunpack.c.l.b16 %v268
    %v340 = vunpack.c.l.b16 %v269
    %v341 = vunpack.c.l.b16 %v270
    %v342 = vunpack.c.l.b16 %v271
    %v343 = vunpack.c.l.b16 %v272
    %v344 = vunpack.c.l.b16 %v273
    %v345 = vunpack.c.l.b16 %v274
    %v346 = vunpack.c.l.b16 %v275
    %v347 = vunpack.c.l.b16 %v276
    %v348 = vunpack.c.l.b16 %v277
    %v349 = vunpack.c.l.b16 %v278
    %v350 = vunpack.c.l.b16 %v279
    %v351 = vpack.c.b16 %v320, %v319
    %v352 = vpack.c.b16 %v322, %v321
    %v353 = vpack.c.b16 %v324, %v323
    %v354 = vpack.c.b16 %v326, %v325
    %v355 = vpack.c.b16 %v328, %v327
    %v356 = vpack.c.b16 %v330, %v329
    %v357 = vpack.c.b16 %v332, %v331
    %v358 = vpack.c.b16 %v334, %v333
    %v359 = vpack.c.b16 %v336, %v335
    %v360 = vpack.c.b16 %v338, %v337
    %v361 = vpack.c.b16 %v340, %v339
    %v362 = vpack.c.b16 %v342, %v341
    %v363 = vpack.c.b16 %v344, %v343
    %v364 = vpack.c.b16 %v346, %v345
    %v365 = vpack.c.b16 %v348, %v347
    %v366 = vpack.c.b16 %v350, %v349
    %383 = vmatprep.subr.bf16.mxu0 0
    %384 = vmatpush1.bf16.msra.mxu0 %v358
    %385 = vmatprep.subr.bf16.mxu0 0
    %386 = vmatpush1.bf16.msra.mxu0 %v357
    %387 = vmatprep.subr.bf16.mxu0 0
    %388 = vmatpush1.bf16.msra.mxu0 %v356
    %389 = vmatprep.subr.bf16.mxu0 0
    %390 = vmatpush1.bf16.msra.mxu0 %v355
    %391 = vmatprep.subr.bf16.mxu0 0
    %392 = vmatpush1.bf16.msra.mxu0 %v354
    %393 = vmatprep.subr.bf16.mxu0 0
    %394 = vmatpush1.bf16.msra.mxu0 %v353
    %395 = vmatprep.subr.bf16.mxu0 0
    %396 = vmatpush1.bf16.msra.mxu0 %v352
    %397 = vmatprep.subr.bf16.mxu0 0
    %398 = vmatpush1.bf16.msra.mxu0 %v351
    %399 = vmatprep.subr.bf16.mxu0 0
    %400 = vmatpush2.bf16.msra.mxu0 %v366
    %401 = vmatprep.subr.bf16.mxu0 0
    %402 = vmatpush2.bf16.msra.mxu0 %v365
    %403 = vmatprep.subr.bf16.mxu0 0
    %404 = vmatpush2.bf16.msra.mxu0 %v364
    %405 = vmatprep.subr.bf16.mxu0 0
    %406 = vmatpush2.bf16.msra.mxu0 %v363
    %407 = vmatprep.subr.bf16.mxu0 0
    %408 = vmatpush2.bf16.msra.mxu0 %v362
    %409 = vmatprep.subr.bf16.mxu0 0
    %410 = vmatpush2.bf16.msra.mxu0 %v361
    %411 = vmatprep.subr.bf16.mxu0 0
    %412 = vmatpush2.bf16.msra.mxu0 %v360
    %413 = vmatprep.subr.bf16.mxu0 0
    %414 = vmatpush2.bf16.msra.mxu0 %v359
    %415 = vmatprep.mubr.bf16.mxu0 %v247
    %416 = vmatmul.mubr.bf16.gmra.mxu0 %v246
    %v417 = vpop.f32.mrf.mxu0
    %v418 = vadd.f32 %v285, %v417
    %v419 = vpop.f32.mrf.mxu0
    %v420 = vpop.f32.mrf.mxu0
    %v421 = vpop.f32.mrf.mxu0
    %422 = vdwg.mxu0
    %424 = vrot.lane.b32.xlu0 %v418, 1
    %v425 = vpop.permute.xlu0 %424
    %v427 = vsub.f32 %v418, %v425
    %v428 = vmul.f32 %v427, 1.442695
    %v429 = vpow.pop %v428
    %v430 = vadd.f32 %v429, 1.0
    %v431 = vrcp.pop %v430
    %v432 = vmul.f32 1.0, %v431
    %v433 = vsub.f32 1.0, %v432
    %v434 = vlaneseq
    %v435 = vand.u32 %v434, 127
    %vm436 = vcmp.eq.s32.totalorder %v435, 0
    %vm437 = vcmp.eq.s32.totalorder %v435, 1
    %vm438 = vcmp.eq.s32.totalorder %v435, 2
    %439 = vset.pattern.permute.xlu0 2
    %440 = vperm.xlu0 %439, %v418
    %v441 = vpop.permute.xlu0 %440
    %v443 = vsel %vm438, %v441, 0.0
    %445 = vset.pattern.permute.xlu0 1
    %446 = vperm.xlu0 %445, %v433
    %v447 = vpop.permute.xlu0 %446
    %v449 = vsel %vm437, %v447, %v443
    %451 = vset.pattern.permute.xlu0 1
    %452 = vperm.xlu0 %451, %v432
    %v453 = vpop.permute.xlu0 %452
    %v455 = vsel %vm436, %v453, %v449
    %vm456 = vcmask 64512
    %457 = vst.msk [vmem:[#allocation5] sm:$0xff] %vm456, %v455
    // Predicated region
    $region30: #{tpu_custom_call.1} parent=1 // pred_check
      _
    $region31: #{tpu_custom_call.1} parent=1 // pred_check_branch
      %459 = sbr.rel (0) target = $region33
    $region32: #{tpu_custom_call.1} parent=1 // pred_region
      %s461 = ssub.s32 128, 128
      %462 = vsyncadd [#allocation4], %s461
      %s464 = sshll.u32 [#allocation5], 4
      %s465 = int_to_ptr.vmem [resolvable:$true] %s464
      %467 = dma.vmem_to_hbm [thread:$0]  %s465, 128, %s6, [#allocation4]
    $region33: #{tpu_custom_call.1} parent=1 // pred_fallthru
      _
    // Predicated region
    $region34: #{tpu_custom_call.1} parent=1 // pred_check
      _
    $region35: #{tpu_custom_call.1} parent=1 // pred_check_branch
      %469 = sbr.rel (0) target = $region37
    $region36: #{tpu_custom_call.1} parent=1 // pred_region
      %470 = dma.done [#allocation4], 128
    $region37: #{tpu_custom_call.1} parent=1 // pred_fallthru
      _
    %471 = vsyncpa [#allocation3], 1
    %472 = vsyncpa [#allocation4], 1

</llo_original>
